<compile_context>
chip_gen: v5e
topology: v5e:2x2
jax: 0.10.0
libtpu: 0.0.40
codegen_flags: <defaults>
</compile_context>

<pallas_src>
import jax
import jax.numpy as jnp
from jax.experimental import pallas as pl
from jax.experimental.pallas import tpu as pltpu

_LANE = 128
_SUBLANE = 8  # f32 sublane packing


def _round_up(v, m):
    return ((v + m - 1) // m) * m


def _choose_tile_b(B, D, O, Hp, Op, *, target=4096, vmem_budget=12 << 20):
    """Largest batch tile that divides B, is a multiple of 8, fits VMEM, and
    leaves >=2 grid steps (pipelining + v7x 2-TensorCore sharding) when possible."""
    if B % _SUBLANE != 0:
        return B  # full-extent block is always legal
    # double-buffered x (f32, D cols) + double-buffered out (f32, O cols)
    # + f32 intermediates h (Hp) and y (Op)
    per_row = 2 * D * 4 + 2 * O * 4 + (Hp + Op) * 4
    cap = min(target, max(_SUBLANE, vmem_budget // per_row))
    if B // 2 >= _SUBLANE:
        cap = min(cap, B // 2)  # guarantee >=2 grid steps
    t = (min(cap, B) // _SUBLANE) * _SUBLANE
    while t >= _SUBLANE:
        if B % t == 0:
            return t
        t -= _SUBLANE
    return B


def prepare_satnet_params(w1, b1, w2, b2):
    """One-time param prep: pad hidden/output feature dims to 128 lanes (f32).

    Zero pads are exact no-ops: relu(x@0 + 0) = 0, and zero rows/columns of W2
    contribute nothing; padded y columns are dropped before the HBM store.
    """
    D, H = w1.shape
    O = w2.shape[1]
    Hp = _round_up(H, _LANE)
    Op = _round_up(O, _LANE)
    w1p = jnp.zeros((D, Hp), jnp.float32).at[:, :H].set(w1.astype(jnp.float32))
    b1p = jnp.zeros((1, Hp), jnp.float32).at[:, :H].set(
        jnp.reshape(b1, (1, H)).astype(jnp.float32))
    w2p = jnp.zeros((Hp, Op), jnp.float32).at[:H, :O].set(w2.astype(jnp.float32))
    b2p = jnp.zeros((1, Op), jnp.float32).at[:, :O].set(
        jnp.reshape(b2, (1, O)).astype(jnp.float32))
    return w1p, b1p, w2p, b2p, O


def satnet_forward(x, params, *, single_output=False, tile_b=None):
    """Fused MLP forward. x: (B, D) f32; params from prepare_satnet_params."""
    w1p, b1p, w2p, b2p, O = params
    B, D = x.shape
    Hp = w1p.shape[1]
    Op = w2p.shape[1]
    x = x.astype(jnp.float32)

    if tile_b is None:
        tile_b = _choose_tile_b(B, D, O, Hp, Op)
    if tile_b != B:
        assert B % tile_b == 0, "tile_b must divide the batch"
        assert tile_b % _SUBLANE == 0, "sub-batch tiles need tile_b % 8 == 0"
    grid = (B // tile_b,)

    def kernel(x_ref, w1_ref, b1_ref, w2_ref, b2_ref, out_ref):
        # x:(TB,D) f32, w1:(D,Hp) f32, b1:(1,Hp) f32, w2:(Hp,Op) f32, b2:(1,Op) f32
        h = jnp.dot(x_ref[...], w1_ref[...], preferred_element_type=jnp.float32)
        h = jnp.maximum(h + b1_ref[...], 0.0)              # bias + ReLU in f32
        y = jnp.dot(h, w2_ref[...], preferred_element_type=jnp.float32)
        y = y + b2_ref[...]
        out_ref[...] = y[:, :O].astype(out_ref.dtype)      # thin (masked) store

    cost = pl.CostEstimate(
        flops=2 * B * (D * Hp + Hp * Op),
        transcendentals=0,
        bytes_accessed=(x.size * 4 + w1p.size * 4 + b1p.size * 4
                        + w2p.size * 4 + b2p.size * 4 + B * O * 4),
    )

    out = pl.pallas_call(
        kernel,
        out_shape=jax.ShapeDtypeStruct((B, O), jnp.float32),
        grid_spec=pltpu.PrefetchScalarGridSpec(
            num_scalar_prefetch=0,
            grid=grid,
            in_specs=[
                pl.BlockSpec((tile_b, D), lambda i: (i, 0)),   # x tile (pipelined)
                pl.BlockSpec((D, Hp), lambda i: (0, 0)),       # W1 (resident)
                pl.BlockSpec((1, Hp), lambda i: (0, 0)),       # b1
                pl.BlockSpec((Hp, Op), lambda i: (0, 0)),      # W2
                pl.BlockSpec((1, Op), lambda i: (0, 0)),       # b2
            ],
            out_specs=pl.BlockSpec((tile_b, O), lambda i: (i, 0)),  # thin output
        ),
        compiler_params=pltpu.CompilerParams(
            dimension_semantics=("parallel",),   # batch tiles shard across v7x's 2 TCs
        ),
        cost_estimate=cost,
    )(x, w1p, b1p, w2p, b2p)

    if single_output:
        # PyTorch: output.squeeze(-1) when the last Linear has out_features=1
        return jnp.squeeze(out, axis=-1)
    return out


def init_satnet_params(key, num_inputs, hidden_size=32, single_output=False):
    """Deterministic init matching nn.Linear default: U(-1/sqrt(fan_in), 1/sqrt(fan_in))."""
    out_features = 1 if single_output else 3
    k1, k2, k3, k4 = jax.random.split(key, 4)
    bound1 = 1.0 / (num_inputs ** 0.5)
    bound2 = 1.0 / (hidden_size ** 0.5)
    w1 = jax.random.uniform(k1, (num_inputs, hidden_size), jnp.float32, -bound1, bound1)
    b1 = jax.random.uniform(k2, (1, hidden_size), jnp.float32, -bound1, bound1)
    w2 = jax.random.uniform(k3, (hidden_size, out_features), jnp.float32, -bound2, bound2)
    b2 = jax.random.uniform(k4, (1, out_features), jnp.float32, -bound2, bound2)
    return w1, b1, w2, b2


def satnet_reference(x, w1, b1, w2, b2, single_output=False):
    """Pure-JAX f32 reference matching the PyTorch module."""
    h = jnp.maximum(jnp.dot(x, w1, preferred_element_type=jnp.float32)
                    + b1.reshape(1, -1), 0.0)
    y = jnp.dot(h, w2, preferred_element_type=jnp.float32) + b2.reshape(1, -1)
    return jnp.squeeze(y, -1) if single_output else y


if __name__ == "__main__":
    key = jax.random.PRNGKey(0)
    kx, kp = jax.random.split(key)

    batch = 64
    num_inputs = 16
    hidden_size = 32

    x = jax.random.normal(kx, (batch, num_inputs), jnp.float32)

    # 3-output head: automatic tiling picks tile_b=32 -> 2 grid steps (pipelined,
    # and sharded across both TensorCores on v7x).
    w1, b1, w2, b2 = init_satnet_params(kp, num_inputs, hidden_size, single_output=False)
    params = prepare_satnet_params(w1, b1, w2, b2)
    out = jax.block_until_ready(satnet_forward(x, params, single_output=False))
    ref = satnet_reference(x, w1, b1, w2, b2, single_output=False)
    assert out.shape == (batch, 3), out.shape
    assert jnp.allclose(out, ref, atol=1e-3, rtol=1e-3), "mismatch vs JAX reference (3-out)"

    # Single-output head (PyTorch squeeze(-1) path), explicit small tile.
    w1s, b1s, w2s, b2s = init_satnet_params(kp, num_inputs, hidden_size, single_output=True)
    params_s = prepare_satnet_params(w1s, b1s, w2s, b2s)
    out_s = jax.block_until_ready(
        satnet_forward(x, params_s, single_output=True, tile_b=16))
    ref_s = satnet_reference(x, w1s, b1s, w2s, b2s, single_output=True)
    assert out_s.shape == (batch,), out_s.shape
    assert jnp.allclose(out_s, ref_s, atol=1e-3, rtol=1e-3), "mismatch vs JAX reference (1-out)"

    print("KERNEL_OK")
</pallas_src>

<mosaic_0001>
module attributes {stable_mosaic.version = 11 : i64} {
  func.func @kernel(%arg0: i32, %arg1: memref<32x16xf32, #tpu.memory_space<vmem>>, %arg2: memref<16x128xf32, #tpu.memory_space<vmem>>, %arg3: memref<1x128xf32, #tpu.memory_space<vmem>>, %arg4: memref<128x128xf32, #tpu.memory_space<vmem>>, %arg5: memref<1x128xf32, #tpu.memory_space<vmem>>, %arg6: memref<32x3xf32, #tpu.memory_space<vmem>>) attributes {dimension_semantics = [#tpu.dimension_semantics<parallel>], iteration_bounds = array<i64: 2>, scalar_prefetch = 0 : i64, scratch_operands = 0 : i64, tpu.core_type = #tpu.core_type<tc>, window_params = [{transform_indices = @transform_0, window_bounds = array<i64: 32, 16>}, {pipeline_mode = #tpu.pipeline_mode<synchronous>, transform_indices = @transform_1, window_bounds = array<i64: 16, 128>}, {pipeline_mode = #tpu.pipeline_mode<synchronous>, transform_indices = @transform_2, window_bounds = array<i64: 1, 128>}, {pipeline_mode = #tpu.pipeline_mode<synchronous>, transform_indices = @transform_3, window_bounds = array<i64: 128, 128>}, {pipeline_mode = #tpu.pipeline_mode<synchronous>, transform_indices = @transform_4, window_bounds = array<i64: 1, 128>}, {transform_indices = @transform_5, window_bounds = array<i64: 32, 3>}]} {
    %c0 = arith.constant 0 : index
    %c0_0 = arith.constant 0 : index
    %0 = vector.load %arg1[%c0, %c0_0] : memref<32x16xf32, #tpu.memory_space<vmem>>, vector<32x16xf32>
    %c0_1 = arith.constant 0 : index
    %c0_2 = arith.constant 0 : index
    %1 = vector.load %arg2[%c0_1, %c0_2] : memref<16x128xf32, #tpu.memory_space<vmem>>, vector<16x128xf32>
    %cst = arith.constant dense<0.000000e+00> : vector<32x128xf32>
    %2 = tpu.matmul %0, %1, %cst {dimension_numbers = #tpu.dot_dimension_numbers<[1], [0], [0], [1], [0, 0, 1, 1], [], []>} : vector<32x16xf32>, vector<16x128xf32>, vector<32x128xf32> -> vector<32x128xf32>
    %c0_3 = arith.constant 0 : index
    %c0_4 = arith.constant 0 : index
    %3 = vector.load %arg3[%c0_3, %c0_4] : memref<1x128xf32, #tpu.memory_space<vmem>>, vector<1x128xf32>
    %4 = vector.broadcast %3 : vector<1x128xf32> to vector<32x128xf32>
    %5 = arith.addf %2, %4 : vector<32x128xf32>
    %cst_5 = arith.constant 0.000000e+00 : f32
    %6 = vector.broadcast %cst_5 : f32 to vector<32x128xf32>
    %7 = arith.maximumf %5, %6 : vector<32x128xf32>
    %c0_6 = arith.constant 0 : index
    %c0_7 = arith.constant 0 : index
    %8 = vector.load %arg4[%c0_6, %c0_7] : memref<128x128xf32, #tpu.memory_space<vmem>>, vector<128x128xf32>
    %cst_8 = arith.constant dense<0.000000e+00> : vector<32x128xf32>
    %9 = tpu.matmul %7, %8, %cst_8 {dimension_numbers = #tpu.dot_dimension_numbers<[1], [0], [0], [1], [0, 0, 1, 1], [], []>} : vector<32x128xf32>, vector<128x128xf32>, vector<32x128xf32> -> vector<32x128xf32>
    %c0_9 = arith.constant 0 : index
    %c0_10 = arith.constant 0 : index
    %10 = vector.load %arg5[%c0_9, %c0_10] : memref<1x128xf32, #tpu.memory_space<vmem>>, vector<1x128xf32>
    %11 = vector.broadcast %10 : vector<1x128xf32> to vector<32x128xf32>
    %12 = arith.addf %9, %11 : vector<32x128xf32>
    %13 = vector.extract_strided_slice %12 {offsets = [0, 0], sizes = [32, 3], strides = [1, 1]} : vector<32x128xf32> to vector<32x3xf32>
    %c0_11 = arith.constant 0 : index
    %c0_12 = arith.constant 0 : index
    %14 = vector.load %arg6[%c0_11, %c0_12] : memref<32x3xf32, #tpu.memory_space<vmem>>, vector<32x3xf32>
    tpu.vector_store %arg6[%c0_11, %c0_12], %13 {strides = array<i32>} : memref<32x3xf32, #tpu.memory_space<vmem>>, vector<32x3xf32>,
    return
  }
  func.func @transform_0(%arg0: i32) -> (i32, i32) {
    %c0_i32 = arith.constant 0 : i32
    %c0_i32_0 = arith.constant 0 : i32
    return %arg0, %c0_i32 : i32, i32
  }
  func.func @transform_1(%arg0: i32) -> (i32, i32) {
    %c0_i32 = arith.constant 0 : i32
    %c0_i32_0 = arith.constant 0 : i32
    %c0_i32_1 = arith.constant 0 : i32
    return %c0_i32, %c0_i32_0 : i32, i32
  }
  func.func @transform_2(%arg0: i32) -> (i32, i32) {
    %c0_i32 = arith.constant 0 : i32
    %c0_i32_0 = arith.constant 0 : i32
    %c0_i32_1 = arith.constant 0 : i32
    return %c0_i32, %c0_i32_0 : i32, i32
  }
  func.func @transform_3(%arg0: i32) -> (i32, i32) {
    %c0_i32 = arith.constant 0 : i32
    %c0_i32_0 = arith.constant 0 : i32
    %c0_i32_1 = arith.constant 0 : i32
    return %c0_i32, %c0_i32_0 : i32, i32
  }
  func.func @transform_4(%arg0: i32) -> (i32, i32) {
    %c0_i32 = arith.constant 0 : i32
    %c0_i32_0 = arith.constant 0 : i32
    %c0_i32_1 = arith.constant 0 : i32
    return %c0_i32, %c0_i32_0 : i32, i32
  }
  func.func @transform_5(%arg0: i32) -> (i32, i32) {
    %c0_i32 = arith.constant 0 : i32
    %c0_i32_0 = arith.constant 0 : i32
    return %arg0, %c0_i32 : i32, i32
  }
}

</mosaic_0001>

<llo_original>
// kernel: tpu_custom_call.1
$region0: #{tpu_custom_call.1}
  #allocation0 [shape = 'u32[]', space=smem, size = 0x4, offset = 0x4, fixed_abs, tag = 'smem constant byte address 0x4 - core index']
  #allocation1 [shape = 'u32[72,128]{1,0:T(1,128)}', space=vmem, size = 0x9000, scoped, tag = 'internal scratch']
  %s0 = inlined_call_operand.vmem [shape: f32[64,16], index: 0, kind: input, shape index: {}]
  %s1 = inlined_call_operand.vmem [shape: f32[16,128], index: 1, kind: input, shape index: {}]
  %s2 = inlined_call_operand.vmem [shape: f32[1,128], index: 2, kind: input, shape index: {}]
  %s3 = inlined_call_operand.hbm [shape: f32[128,128], index: 3, kind: input, shape index: {}]
  %s4 = inlined_call_operand.vmem [shape: f32[1,128], index: 4, kind: input, shape index: {}]
  %s5 = inlined_call_operand.vmem [shape: f32[64,3], index: 5, kind: output, shape index: {}]
  %s6 = sld [smem:[#allocation0]]
  $region57: #{tpu_custom_call.1} parent=0
    _
  %s8 = ssub.s32 1, %s6
  %s9 = scalar_select 0, %s8, %s6
  $region1: #{tpu_custom_call.1} parent=0
    #allocation2 [shape = 'u8[65536]{0}', space=vmem, size = 0x10000, scoped, tag = 'input window, operand 3, single buffered']
    #allocation3 [shape = 's32[2]{0}', space=sflag, size = 0x8, scoped, tag = 'scoped memory for tpu_custom_call.1']
    %10 = vsyncpa [#allocation3], 0
    loop: start=0, step=1, limit=4
    $region2: #{tpu_custom_call.1} parent=1 // loop_pre_header
      _
    $region3: #{tpu_custom_call.1} parent=1 // loop_header
      %s12 = sphi 0, %s16
      %p13 = scmp.ge.s32.totalorder %s12, 4
      %s22 = sphi 0, %s24
      %s25 = sphi 0, %s22
      %s26 = sphi 0, %s25
      %s42 = sphi 0, %s26
      %s46 = sphi 0, %s46
      %s48 = sphi 0, %s46
      %s49 = sphi 0, %s48
      %s63 = sphi 0, %s49
      %s67 = sphi 0, %s67
      %s69 = sphi 0, %s67
      %s70 = sphi 0, %s69
      %s84 = sphi 0, %s70
      %s88 = sphi 0, %s88
      %s90 = sphi 0, %s88
      %s91 = sphi 0, %s90
      %s105 = sphi 0, %s91
      %s109 = sphi 0, %s109
      %s111 = sphi 0, %s109
      %s112 = sphi 0, %s111
      %s126 = sphi 0, %s112
      %s132 = sphi 0, %s134
      %s135 = sphi 0, %s132
      %s136 = sphi 0, %s135
      %s152 = sphi 0, %s136
    $region4: #{tpu_custom_call.1} parent=1 // loop_header_branch
      %15 = sbr.rel (%p13) target = $region8
    $region5: #{tpu_custom_call.1} parent=1 // loop_body
      %s17 = ssub.s32 %s12, 1
      %s18 = ssub.s32 %s12, 2
      %s19 = sadd.s32 %s12, 1
      %s20 = ssub.s32 %s12, %s19
      %p21 = scmp.eq.s32.totalorder %s20, 0
      %s23 = sadd.s32 %s22, 1
      %s24 = scalar_select %p21, %s22, %s23
      %p27 = pneg %p21
      %p28 = scmp.eq.s32.totalorder %s12, 1
      %p29 = por %p27, %p28
      %p30 = scmp.ne.s32.totalorder %s22, %s25
      %p31 = scmp.eq.s32.totalorder %s12, 0
      %p32 = por %p30, %p31
      %p33 = scmp.ne.s32.totalorder %s22, %s25
      %p34 = scmp.eq.s32.totalorder %s17, 1
      %p35 = por %p33, %p34
      %p36 = scmp.ne.s32.totalorder %s25, %s26
      %p37 = scmp.eq.s32.totalorder %s17, 0
      %p38 = por %p36, %p37
      %p39 = scmp.ne.s32.totalorder %s25, %s26
      %p40 = scmp.eq.s32.totalorder %s18, 1
      %p41 = por %p39, %p40
      %p43 = scmp.ne.s32.totalorder %s26, %s42
      %p44 = scmp.eq.s32.totalorder %s18, 0
      %p45 = por %p43, %p44
      %s47 = sadd.s32 %s46, 1
      %p50 = scmp.eq.s32.totalorder %s12, 1
      %p51 = scmp.ne.s32.totalorder %s46, %s48
      %p52 = scmp.eq.s32.totalorder %s12, 0
      %p53 = por %p51, %p52
      %p54 = scmp.ne.s32.totalorder %s46, %s48
      %p55 = scmp.eq.s32.totalorder %s17, 1
      %p56 = por %p54, %p55
      %p57 = scmp.ne.s32.totalorder %s48, %s49
      %p58 = scmp.eq.s32.totalorder %s17, 0
      %p59 = por %p57, %p58
      %p60 = scmp.ne.s32.totalorder %s48, %s49
      %p61 = scmp.eq.s32.totalorder %s18, 1
      %p62 = por %p60, %p61
      %p64 = scmp.ne.s32.totalorder %s49, %s63
      %p65 = scmp.eq.s32.totalorder %s18, 0
      %p66 = por %p64, %p65
      %s68 = sadd.s32 %s67, 1
      %p71 = scmp.eq.s32.totalorder %s12, 1
      %p72 = scmp.ne.s32.totalorder %s67, %s69
      %p73 = scmp.eq.s32.totalorder %s12, 0
      %p74 = por %p72, %p73
      %p75 = scmp.ne.s32.totalorder %s67, %s69
      %p76 = scmp.eq.s32.totalorder %s17, 1
      %p77 = por %p75, %p76
      %p78 = scmp.ne.s32.totalorder %s69, %s70
      %p79 = scmp.eq.s32.totalorder %s17, 0
      %p80 = por %p78, %p79
      %p81 = scmp.ne.s32.totalorder %s69, %s70
      %p82 = scmp.eq.s32.totalorder %s18, 1
      %p83 = por %p81, %p82
      %p85 = scmp.ne.s32.totalorder %s70, %s84
      %p86 = scmp.eq.s32.totalorder %s18, 0
      %p87 = por %p85, %p86
      %s89 = sadd.s32 %s88, 1
      %p92 = scmp.eq.s32.totalorder %s12, 1
      %p93 = scmp.ne.s32.totalorder %s88, %s90
      %p94 = scmp.eq.s32.totalorder %s12, 0
      %p95 = por %p93, %p94
      %p96 = scmp.ne.s32.totalorder %s88, %s90
      %p97 = scmp.eq.s32.totalorder %s17, 1
      %p98 = por %p96, %p97
      %p99 = scmp.ne.s32.totalorder %s90, %s91
      %p100 = scmp.eq.s32.totalorder %s17, 0
      %p101 = por %p99, %p100
      %p102 = scmp.ne.s32.totalorder %s90, %s91
      %p103 = scmp.eq.s32.totalorder %s18, 1
      %p104 = por %p102, %p103
      %p106 = scmp.ne.s32.totalorder %s91, %s105
      %p107 = scmp.eq.s32.totalorder %s18, 0
      %p108 = por %p106, %p107
      %s110 = sadd.s32 %s109, 1
      %p113 = scmp.eq.s32.totalorder %s12, 1
      %p114 = scmp.ne.s32.totalorder %s109, %s111
      %p115 = scmp.eq.s32.totalorder %s12, 0
      %p116 = por %p114, %p115
      %p117 = scmp.ne.s32.totalorder %s109, %s111
      %p118 = scmp.eq.s32.totalorder %s17, 1
      %p119 = por %p117, %p118
      %p120 = scmp.ne.s32.totalorder %s111, %s112
      %p121 = scmp.eq.s32.totalorder %s17, 0
      %p122 = por %p120, %p121
      %p123 = scmp.ne.s32.totalorder %s111, %s112
      %p124 = scmp.eq.s32.totalorder %s18, 1
      %p125 = por %p123, %p124
      %p127 = scmp.ne.s32.totalorder %s112, %s126
      %p128 = scmp.eq.s32.totalorder %s18, 0
      %p129 = por %p127, %p128
      %s130 = ssub.s32 %s12, %s19
      %p131 = scmp.eq.s32.totalorder %s130, 0
      %s133 = sadd.s32 %s132, 1
      %s134 = scalar_select %p131, %s132, %s133
      %p137 = pneg %p131
      %p138 = scmp.eq.s32.totalorder %s12, 1
      %p139 = por %p137, %p138
      %p140 = scmp.ne.s32.totalorder %s132, %s135
      %p141 = scmp.eq.s32.totalorder %s12, 0
      %p142 = por %p140, %p141
      %p143 = scmp.ne.s32.totalorder %s132, %s135
      %p144 = scmp.eq.s32.totalorder %s17, 1
      %p145 = por %p143, %p144
      %p146 = scmp.ne.s32.totalorder %s135, %s136
      %p147 = scmp.eq.s32.totalorder %s17, 0
      %p148 = por %p146, %p147
      %p149 = scmp.ne.s32.totalorder %s135, %s136
      %p150 = scmp.eq.s32.totalorder %s18, 1
      %p151 = por %p149, %p150
      %p153 = scmp.ne.s32.totalorder %s136, %s152
      %p154 = scmp.eq.s32.totalorder %s18, 0
      %p155 = por %p153, %p154
      %p156 = scmp.le.s32.totalorder 1, %s12
      %p157 = scmp.lt.s32.totalorder %s12, 3
      %p158 = pnand %p156, %p157
      %p159 = pneg %p158
      // Predicated region
      $region9: #{tpu_custom_call.1} parent=5 // pred_check
        _
      $region10: #{tpu_custom_call.1} parent=5 // pred_check_branch
        %161 = sbr.rel (%p158) target = $region12
      $region11: #{tpu_custom_call.1} parent=5 // pred_region
        %s162 = ssub.s32 %s12, 1
        // Predicated region
        $region13: #{tpu_custom_call.1} parent=11 // pred_check
          %p163 = pneg %p59
        $region14: #{tpu_custom_call.1} parent=11 // pred_check_branch
          %165 = sbr.rel (%p163) target = $region16
        $region15: #{tpu_custom_call.1} parent=11 // pred_region
          _
        $region16: #{tpu_custom_call.1} parent=11 // pred_fallthru
          _
        // Predicated region
        $region17: #{tpu_custom_call.1} parent=11 // pred_check
          %p166 = pneg %p80
        $region18: #{tpu_custom_call.1} parent=11 // pred_check_branch
          %168 = sbr.rel (%p166) target = $region20
        $region19: #{tpu_custom_call.1} parent=11 // pred_region
          _
        $region20: #{tpu_custom_call.1} parent=11 // pred_fallthru
          _
        // Predicated region
        $region21: #{tpu_custom_call.1} parent=11 // pred_check
          %p169 = pneg %p101
        $region22: #{tpu_custom_call.1} parent=11 // pred_check_branch
          %171 = sbr.rel (%p169) target = $region24
        $region23: #{tpu_custom_call.1} parent=11 // pred_region
          %173 = vsyncadd [#allocation3], 0
          %s174 = sshll.u32 %s3, 4
          %s175 = int_to_ptr.hbm [resolvable:$true] %s174
          %s176 = sshll.u32 [#allocation2], 4
          %s177 = int_to_ptr.vmem [resolvable:$true] %s176
          %182 = dma.hbm_to_vmem [thread:$0]  %s175, 2048, %s177, [#allocation3], 128, 128, 8
        $region24: #{tpu_custom_call.1} parent=11 // pred_fallthru
          _
        // Predicated region
        $region25: #{tpu_custom_call.1} parent=11 // pred_check
          %p183 = pneg %p122
        $region26: #{tpu_custom_call.1} parent=11 // pred_check_branch
          %185 = sbr.rel (%p183) target = $region28
        $region27: #{tpu_custom_call.1} parent=11 // pred_region
          _
        $region28: #{tpu_custom_call.1} parent=11 // pred_fallthru
          _
      $region12: #{tpu_custom_call.1} parent=5 // pred_fallthru
        _
      %p186 = scmp.lt.s32.totalorder %s12, 2
      // Predicated region
      $region29: #{tpu_custom_call.1} parent=5 // pred_check
        %p187 = pneg %p186
      $region30: #{tpu_custom_call.1} parent=5 // pred_check_branch
        %189 = sbr.rel (%p187) target = $region32
      $region31: #{tpu_custom_call.1} parent=5 // pred_region
        // Predicated region
        $region33: #{tpu_custom_call.1} parent=31 // pred_check
          %p190 = pneg %p32
        $region34: #{tpu_custom_call.1} parent=31 // pred_check_branch
          %192 = sbr.rel (%p190) target = $region36
        $region35: #{tpu_custom_call.1} parent=31 // pred_region
          %s193 = smul.u32 4, %s12
          %p194 = scmp.lt.s32.totalorder %s193, 7
          %s195 = scalar_select %p194, %s193, 7
          %s196 = smul.addr %s195, 8
          %s197 = scalar_lea.vmem %s0, %s196
          %s198 = smul.u32 4, %s12
        $region36: #{tpu_custom_call.1} parent=31 // pred_fallthru
          _
      $region32: #{tpu_custom_call.1} parent=5 // pred_fallthru
        _
      %p199 = scmp.le.s32.totalorder 1, %s12
      %p200 = scmp.lt.s32.totalorder %s12, 3
      %p201 = pnand %p199, %p200
      %p202 = pneg %p201
      // Predicated region
      $region37: #{tpu_custom_call.1} parent=5 // pred_check
        _
      $region38: #{tpu_custom_call.1} parent=5 // pred_check_branch
        %204 = sbr.rel (%p201) target = $region40
      $region39: #{tpu_custom_call.1} parent=5 // pred_region
        %s205 = ssub.s32 %s12, 1
        // Predicated region
        $region41: #{tpu_custom_call.1} parent=39 // pred_check
          %p206 = pneg %p101
        $region42: #{tpu_custom_call.1} parent=39 // pred_check_branch
          %208 = sbr.rel (%p206) target = $region44
        $region43: #{tpu_custom_call.1} parent=39 // pred_region
          %210 = dma.done [#allocation3], 2048
        $region44: #{tpu_custom_call.1} parent=39 // pred_fallthru
          _
        %s211 = smul.u32 4, %s17
        %p212 = scmp.lt.s32.totalorder %s211, 7
        %s213 = scalar_select %p212, %s211, 7
        %s214 = smul.addr %s213, 8
        %s215 = scalar_lea.vmem %s0, %s214
        %p216 = pneg %p38
        %p217 = pneg %p35
        %p218 = pneg %p59
        %p219 = pneg %p56
        %p220 = pneg %p80
        %p221 = pneg %p77
        %p222 = pneg %p101
        %p223 = pneg %p98
        %p224 = pneg %p122
        %p225 = pneg %p119
        %p226 = pneg %p148
        %p227 = pneg %p145
        %s228 = smul.u32 4, %s17
        %p229 = scmp.lt.s32.totalorder %s228, 7
        %s230 = scalar_select %p229, %s228, 7
        %s231 = smul.addr %s230, 8
        %s232 = scalar_lea.vmem %s5, %s231
        %s233 = smul.u32 4, %s17
        %p234 = scmp.lt.s32.totalorder %s233, 7
        %s235 = scalar_select %p234, %s233, 7
        %s236 = smul.addr %s235, 8
        %s237 = scalar_lea.vmem %s0, %s236
        %s238 = smul.u32 4, %s17
        %s239 = smul.u32 4, %s17
        %p240 = scmp.lt.s32.totalorder %s239, 7
        %s241 = scalar_select %p240, %s239, 7
        %s242 = smul.addr %s241, 8
        %s243 = scalar_lea.vmem %s5, %s242
        %s244 = smul.u32 4, %s17
        %v245 = vld [vmem:[%s237] sm:$0xff]
        %v246 = vld [vmem:[%s237 + $0x8] sm:$0xff]
        %v247 = vld [vmem:[%s237 + $0x10] sm:$0xff]
        %v248 = vld [vmem:[%s237 + $0x18] sm:$0xff]
        %v249 = vld [vmem:[%s1] sm:$0xff]
        %v250 = vld [vmem:[%s1 + $0x8] sm:$0xff]
        %v251 = vld [vmem:[%s2] sm:$0x1]
        %v253 = vperm.slane %v251, 0
        %vm255 = vcmask 130048
        %v257 = vsel %vm255, %v245, 0
        %v260 = vsel %vm255, %v246, 0
        %v263 = vsel %vm255, %v247, 0
        %v266 = vsel %vm255, %v248, 0
        %268 = vmatpush.msra.mxu0 0.0
        %269 = vmatpush.msra.mxu0 0.0
        %270 = vmatpush.msra.mxu0 0.0
        %271 = vmatpush.msra.mxu0 0.0
        %272 = vmatpush.msra.mxu0 0.0
        %273 = vmatpush.msra.mxu0 0.0
        %274 = vmatpush.msra.mxu0 0.0
        %275 = vmatpush.msra.mxu0 0.0
        %276 = vmatpush.msra.mxu0 0.0
        %277 = vmatpush.msra.mxu0 0.0
        %278 = vmatpush.msra.mxu0 0.0
        %279 = vmatpush.msra.mxu0 0.0
        %280 = vmatpush.msra.mxu0 0.0
        %281 = vmatpush.msra.mxu0 0.0
        %282 = vmatpush.msra.mxu0 %v250
        %283 = vmatpush.msra.mxu0 %v249
        %284 = vmatmul.f32.gmra.mxu0 %v257
        %v285 = vpop.f32.mrf.mxu0
        %v286 = vadd.f32 %v253, %v285
        %287 = vmatmul.f32.gmra.mxu0 %v260
        %v288 = vpop.f32.mrf.mxu0
        %v289 = vadd.f32 %v253, %v288
        %290 = vmatmul.f32.gmra.mxu0 %v263
        %v291 = vpop.f32.mrf.mxu0
        %v292 = vadd.f32 %v253, %v291
        %293 = vmatmul.f32.gmra.mxu0 %v266
        %v294 = vpop.f32.mrf.mxu0
        %v295 = vadd.f32 %v253, %v294
        %296 = vdwg.mxu0
        %v297 = vmax.f32 %v286, 0.0
        %v298 = vmax.f32 %v289, 0.0
        %v299 = vmax.f32 %v292, 0.0
        %v300 = vmax.f32 %v295, 0.0
        %v301 = vld [vmem:[#allocation2] sm:$0xff]
        %v302 = vld [vmem:[#allocation2 + $0x8] sm:$0xff]
        %v303 = vld [vmem:[#allocation2 + $0x10] sm:$0xff]
        %v304 = vld [vmem:[#allocation2 + $0x18] sm:$0xff]
        %v305 = vld [vmem:[#allocation2 + $0x20] sm:$0xff]
        %v306 = vld [vmem:[#allocation2 + $0x28] sm:$0xff]
        %v307 = vld [vmem:[#allocation2 + $0x30] sm:$0xff]
        %v308 = vld [vmem:[#allocation2 + $0x38] sm:$0xff]
        %v309 = vld [vmem:[#allocation2 + $0x40] sm:$0xff]
        %v310 = vld [vmem:[#allocation2 + $0x48] sm:$0xff]
        %v311 = vld [vmem:[#allocation2 + $0x50] sm:$0xff]
        %v312 = vld [vmem:[#allocation2 + $0x58] sm:$0xff]
        %v313 = vld [vmem:[#allocation2 + $0x60] sm:$0xff]
        %v314 = vld [vmem:[#allocation2 + $0x68] sm:$0xff]
        %v315 = vld [vmem:[#allocation2 + $0x70] sm:$0xff]
        %v316 = vld [vmem:[#allocation2 + $0x78] sm:$0xff]
        %v317 = vld [vmem:[%s4] sm:$0x1]
        %v319 = vperm.slane %v317, 0
        %321 = vmatpush.msra.mxu0 %v316
        %322 = vmatpush.msra.mxu0 %v315
        %323 = vmatpush.msra.mxu0 %v314
        %324 = vmatpush.msra.mxu0 %v313
        %325 = vmatpush.msra.mxu0 %v312
        %326 = vmatpush.msra.mxu0 %v311
        %327 = vmatpush.msra.mxu0 %v310
        %328 = vmatpush.msra.mxu0 %v309
        %329 = vmatpush.msra.mxu0 %v308
        %330 = vmatpush.msra.mxu0 %v307
        %331 = vmatpush.msra.mxu0 %v306
        %332 = vmatpush.msra.mxu0 %v305
        %333 = vmatpush.msra.mxu0 %v304
        %334 = vmatpush.msra.mxu0 %v303
        %335 = vmatpush.msra.mxu0 %v302
        %336 = vmatpush.msra.mxu0 %v301
        %337 = vmatmul.f32.gmra.mxu0 %v297
        %v338 = vpop.f32.mrf.mxu0
        %v339 = vadd.f32 %v319, %v338
        %340 = vmatmul.f32.gmra.mxu0 %v298
        %v341 = vpop.f32.mrf.mxu0
        %v342 = vadd.f32 %v319, %v341
        %343 = vmatmul.f32.gmra.mxu0 %v299
        %v344 = vpop.f32.mrf.mxu0
        %v345 = vadd.f32 %v319, %v344
        %346 = vmatmul.f32.gmra.mxu0 %v300
        %v347 = vpop.f32.mrf.mxu0
        %v348 = vadd.f32 %v319, %v347
        %349 = vdwg.mxu0
        %vm350 = vcmask 23552
        %351 = vst.msk [vmem:[%s243] sm:$0xff] %vm350, %v339
        %352 = vst.msk [vmem:[%s243 + $0x8] sm:$0xff] %vm350, %v342
        %353 = vst.msk [vmem:[%s243 + $0x10] sm:$0xff] %vm350, %v345
        %354 = vst.msk [vmem:[%s243 + $0x18] sm:$0xff] %vm350, %v348
        %s355 = smul.u32 4, %s17
        %p356 = scmp.lt.s32.totalorder %s355, 7
        %s357 = scalar_select %p356, %s355, 7
        %s358 = smul.addr %s357, 8
        %s359 = scalar_lea.vmem %s5, %s358
        // Predicated region
        $region45: #{tpu_custom_call.1} parent=39 // pred_check
          %p360 = pneg %p145
        $region46: #{tpu_custom_call.1} parent=39 // pred_check_branch
          %362 = sbr.rel (%p360) target = $region48
        $region47: #{tpu_custom_call.1} parent=39 // pred_region
          %s363 = smul.u32 4, %s17
        $region48: #{tpu_custom_call.1} parent=39 // pred_fallthru
          _
      $region40: #{tpu_custom_call.1} parent=5 // pred_fallthru
        _
      %p364 = scmp.le.s32.totalorder 2, %s12
      // Predicated region
      $region49: #{tpu_custom_call.1} parent=5 // pred_check
        %p365 = pneg %p364
      $region50: #{tpu_custom_call.1} parent=5 // pred_check_branch
        %367 = sbr.rel (%p365) target = $region52
      $region51: #{tpu_custom_call.1} parent=5 // pred_region
        %s368 = ssub.s32 %s12, 2
        // Predicated region
        $region53: #{tpu_custom_call.1} parent=51 // pred_check
          %p369 = pneg %p151
        $region54: #{tpu_custom_call.1} parent=51 // pred_check_branch
          %371 = sbr.rel (%p369) target = $region56
        $region55: #{tpu_custom_call.1} parent=51 // pred_region
          %s372 = smul.u32 4, %s18
          %p373 = scmp.lt.s32.totalorder %s372, 7
          %s374 = scalar_select %p373, %s372, 7
          %s375 = smul.addr %s374, 8
          %s376 = scalar_lea.vmem %s5, %s375
        $region56: #{tpu_custom_call.1} parent=51 // pred_fallthru
          _
      $region52: #{tpu_custom_call.1} parent=5 // pred_fallthru
        _
    $region6: #{tpu_custom_call.1} parent=1 // loop_footer
      %s16 = sadd.s32 1, %s12
    $region7: #{tpu_custom_call.1} parent=1 // loop_footer_branch
      %11 = sbr.rel target = $region3
    $region8: #{tpu_custom_call.1} parent=1 // loop_exit
      _
    %377 = vsyncpa [#allocation3], 1
    %s378 = scalar_lea.sflag [#allocation3], 1
    %379 = vsyncpa %s378, 1

</llo_original>
